<compile_context>
chip_gen: v7x
topology: tpu7x:2x2x1
jax: 0.10.0
libtpu: 0.0.40
codegen_flags: <defaults>
</compile_context>

<pallas_src>
import jax
import jax.numpy as jnp
import numpy as np
from jax import lax
from jax.experimental import pallas as pl
from jax.experimental.pallas import tpu as pltpu


def _criterion_kernel(wl_ref, cl_ref, side_ref,
                      wsum_ref, csum_ref, msum_ref,
                      acc_w, acc_c, acc_m):
    i = pl.program_id(1)

    @pl.when(i == 0)
    def _init():
        acc_w[...] = jnp.zeros_like(acc_w)
        acc_c[...] = jnp.zeros_like(acc_c)
        acc_m[...] = jnp.zeros_like(acc_m)

    side = side_ref[...]                      # (R, 3) f32: [word_tgt, ccg_tgt, mask]
    wt = side[:, 0:1].astype(jnp.int32)       # (R, 1)
    ct = side[:, 1:2].astype(jnp.int32)       # (R, 1)
    m = side[:, 2:3]                          # (R, 1) f32

    wl = wl_ref[...].astype(jnp.float32)      # (R, Vw)  f32 math even if bf16 in HBM
    cl = cl_ref[...].astype(jnp.float32)      # (R, Vc)

    # gather(labels, 1, target) as one-hot select + lane reduction
    iota_w = lax.broadcasted_iota(jnp.int32, wl.shape, 1)
    pick_w = jnp.sum(jnp.where(iota_w == wt, wl, 0.0), axis=-1, keepdims=True)
    iota_c = lax.broadcasted_iota(jnp.int32, cl.shape, 1)
    pick_c = jnp.sum(jnp.where(iota_c == ct, cl, 0.0), axis=-1, keepdims=True)

    # Guard with a select (not a multiply): rows past the real end of the data
    # may contain garbage (possibly NaN) labels but always have mask == 0.
    valid = m != 0.0
    acc_w[...] += jnp.where(valid, -pick_w * m, 0.0)
    acc_c[...] += jnp.where(valid, -pick_c * m, 0.0)
    acc_m[...] += m

    @pl.when(i == pl.num_programs(1) - 1)
    def _fin():
        wsum_ref[...] = jnp.sum(acc_w[...]).reshape(1, 1, 1)
        csum_ref[...] = jnp.sum(acc_c[...]).reshape(1, 1, 1)
        msum_ref[...] = jnp.sum(acc_m[...]).reshape(1, 1, 1)


def _round_up(x, m):
    return ((x + m - 1) // m) * m


def lm_ccg_criterion(word_labels, ccg_labels, word_target, ccg_target, mask,
                     *, row_tile=None, num_chunks=2,
                     label_block_budget_bytes=16 << 20):
    """word_labels: (B, Tw, Vw); ccg_labels: (B, Tc, Vc);
    word_target / ccg_target / mask: (B, T >= Tw)."""
    B, Tw, Vw = word_labels.shape
    Bc, Tc, Vc = ccg_labels.shape
    assert B == Bc
    assert Tc == Tw, "original torch code reuses the word mask; requires Tc == Tw"

    N = B * Tw
    # Free, metadata-only reshapes; native dtype, no padding of the big tensors.
    wl = word_labels.reshape(N, Vw)
    cl = ccg_labels.reshape(N, Vc)

    wl_bytes = jnp.dtype(wl.dtype).itemsize
    cl_bytes = jnp.dtype(cl.dtype).itemsize
    # sublane packing: 8 for 32-bit, 16 for bf16, 32 for 8-bit
    packing = max((4 // max(wl_bytes, 1)) * 8, (4 // max(cl_bytes, 1)) * 8, 8)

    row_bytes = Vw * wl_bytes + Vc * cl_bytes
    if row_tile is None:
        rt = label_block_budget_bytes // (2 * row_bytes)   # double-buffered
        rt = max(packing, (rt // packing) * packing)
        rt = min(rt, 1024)
    else:
        rt = _round_up(max(int(row_tile), 1), packing)
    rt = min(rt, _round_up(N, packing))                    # never bigger than needed

    n_tiles = -(-N // rt)
    C = num_chunks if n_tiles >= num_chunks else 1         # leading "parallel" axis
    tiles_per_chunk = -(-n_tiles // C)
    total_tiles = C * tiles_per_chunk
    Np = total_tiles * rt

    # Pack targets + mask into one small side tensor (targets exact in f32).
    wt = word_target[:, :Tw].reshape(N).astype(jnp.float32)
    ct = ccg_target[:, :Tc].reshape(N).astype(jnp.float32)
    m = mask[:, :Tw].reshape(N).astype(jnp.float32)
    side = jnp.stack([wt, ct, m], axis=-1)                 # (N, 3)
    if Np > N:
        side = jnp.pad(side, ((0, Np - N), (0, 0)))        # padded rows: mask == 0

    last_tile = n_tiles - 1

    def lbl_map(c, i):
        # Clamp so fully-out-of-range tail tiles (possible when C > 1) re-read
        # the last valid block; their contribution is masked out in-kernel.
        return (jnp.minimum(c * tiles_per_chunk + i, last_tile), 0)

    def side_map(c, i):
        return (c * tiles_per_chunk + i, 0)

    vmem_limit = int(2 * rt * row_bytes        # double-buffered label blocks
                     + 2 * rt * 128 * 4        # side blocks (lane-padded)
                     + 3 * rt * 128 * 4        # vector accumulators
                     + (4 << 20))              # margin
    vmem_limit = min(max(vmem_limit, 32 << 20), 64 << 20)

    w_part, c_part, m_part = pl.pallas_call(
        _criterion_kernel,
        out_shape=(jax.ShapeDtypeStruct((C, 1, 1), jnp.float32),
                   jax.ShapeDtypeStruct((C, 1, 1), jnp.float32),
                   jax.ShapeDtypeStruct((C, 1, 1), jnp.float32)),
        grid_spec=pltpu.PrefetchScalarGridSpec(
            num_scalar_prefetch=0,
            grid=(C, tiles_per_chunk),
            in_specs=[
                pl.BlockSpec((rt, Vw), lbl_map),
                pl.BlockSpec((rt, Vc), lbl_map),
                pl.BlockSpec((rt, 3), side_map),
            ],
            out_specs=[
                pl.BlockSpec((1, 1, 1), lambda c, i: (c, 0, 0)),
                pl.BlockSpec((1, 1, 1), lambda c, i: (c, 0, 0)),
                pl.BlockSpec((1, 1, 1), lambda c, i: (c, 0, 0)),
            ],
            scratch_shapes=[
                pltpu.VMEM((rt, 1), jnp.float32),
                pltpu.VMEM((rt, 1), jnp.float32),
                pltpu.VMEM((rt, 1), jnp.float32),
            ],
        ),
        compiler_params=pltpu.CompilerParams(
            dimension_semantics=("parallel", "arbitrary"),
            vmem_limit_bytes=vmem_limit),
    )(wl, cl, side)

    sum_m = jnp.sum(m_part)
    out_word = jnp.sum(w_part) / sum_m
    out_ccg = jnp.sum(c_part) / sum_m
    return out_word, out_ccg


def _reference(word_labels, ccg_labels, word_target, ccg_target, mask):
    B, Tw, Vw = word_labels.shape
    _, Tc, Vc = ccg_labels.shape
    wl = word_labels.reshape(-1, Vw).astype(jnp.float32)
    cl = ccg_labels.reshape(-1, Vc).astype(jnp.float32)
    wt = word_target[:, :Tw].reshape(-1, 1)
    ct = ccg_target[:, :Tc].reshape(-1, 1)
    m = mask[:, :Tw].reshape(-1, 1).astype(jnp.float32)
    out_w = jnp.sum(-jnp.take_along_axis(wl, wt, axis=1) * m) / jnp.sum(m)
    out_c = jnp.sum(-jnp.take_along_axis(cl, ct, axis=1) * m) / jnp.sum(m)
    return out_w, out_c


def _run_case(tag, B, T, T_full, Vw, Vc, dtype, row_tile=None):
    key = jax.random.fold_in(jax.random.PRNGKey(0), tag)
    k1, k2, k3, k4 = jax.random.split(key, 4)
    word_labels = jax.nn.log_softmax(
        jax.random.normal(k1, (B, T, Vw), jnp.float32), axis=-1).astype(dtype)
    ccg_labels = jax.nn.log_softmax(
        jax.random.normal(k2, (B, T, Vc), jnp.float32), axis=-1).astype(dtype)
    word_target = jax.random.randint(k3, (B, T_full), 0, Vw, dtype=jnp.int32)
    ccg_target = jax.random.randint(k4, (B, T_full), 0, Vc, dtype=jnp.int32)
    lens = jnp.minimum(3 + 2 * jnp.arange(B, dtype=jnp.int32), T)
    mask = (jnp.arange(T_full)[None, :] < lens[:, None]).astype(jnp.float32)

    out_w, out_c = lm_ccg_criterion(word_labels, ccg_labels,
                                    word_target, ccg_target, mask,
                                    row_tile=row_tile)
    jax.block_until_ready((out_w, out_c))

    ref_w, ref_c = _reference(word_labels, ccg_labels,
                              word_target, ccg_target, mask)
    np.testing.assert_allclose(np.asarray(out_w), np.asarray(ref_w),
                               rtol=2e-5, atol=2e-5)
    np.testing.assert_allclose(np.asarray(out_c), np.asarray(ref_c),
                               rtol=2e-5, atol=2e-5)


if __name__ == "__main__":
    # Case 1: small f32 inputs (single tile, single chunk).
    _run_case(0, B=2, T=8, T_full=10, Vw=128, Vc=64, dtype=jnp.float32)
    # Case 2: bf16 labels (native dtype streamed), ragged rows (N=15),
    #         non-multiple-of-128 vocab widths.
    _run_case(1, B=3, T=5, T_full=7, Vw=200, Vc=48, dtype=jnp.bfloat16)
    # Case 3: multi-tile reduction split over two parallel row chunks,
    #         with a clamped (fully out-of-range) tail tile.
    _run_case(2, B=5, T=8, T_full=9, Vw=128, Vc=64, dtype=jnp.float32,
              row_tile=8)
    print("KERNEL_OK")
</pallas_src>

<mosaic_0001>
module attributes {stable_mosaic.version = 11 : i64} {
  func.func @_criterion_kernel(%arg0: i32, %arg1: i32, %arg2: memref<16x128xf32, #tpu.memory_space<vmem>>, %arg3: memref<16x64xf32, #tpu.memory_space<vmem>>, %arg4: memref<16x3xf32, #tpu.memory_space<vmem>>, %arg5: memref<1x1x1xf32, #tpu.memory_space<vmem>>, %arg6: memref<1x1x1xf32, #tpu.memory_space<vmem>>, %arg7: memref<1x1x1xf32, #tpu.memory_space<vmem>>, %arg8: memref<16x1xf32, #tpu.memory_space<vmem>>, %arg9: memref<16x1xf32, #tpu.memory_space<vmem>>, %arg10: memref<16x1xf32, #tpu.memory_space<vmem>>) attributes {dimension_semantics = [#tpu.dimension_semantics<parallel>, #tpu.dimension_semantics<arbitrary>], iteration_bounds = array<i64: 1, 1>, scalar_prefetch = 0 : i64, scratch_operands = 3 : i64, tpu.core_type = #tpu.core_type<tc>, window_params = [{transform_indices = @transform_0, window_bounds = array<i64: 16, 128>}, {transform_indices = @transform_1, window_bounds = array<i64: 16, 64>}, {transform_indices = @transform_2, window_bounds = array<i64: 16, 3>}, {transform_indices = @transform_3, window_bounds = array<i64: 1, 1, 1>}, {transform_indices = @transform_4, window_bounds = array<i64: 1, 1, 1>}, {transform_indices = @transform_5, window_bounds = array<i64: 1, 1, 1>}]} {
    %c0_i32 = arith.constant 0 : i32
    %0 = arith.cmpi eq, %arg1, %c0_i32 : i32
    %1 = arith.extui %0 : i1 to i32
    %c0_i32_0 = arith.constant 0 : i32
    %2 = arith.cmpi ne, %1, %c0_i32_0 : i32
    scf.if %2 {
      %cst_28 = arith.constant 0.000000e+00 : f32
      %49 = vector.broadcast %cst_28 : f32 to vector<16x1xf32>
      %c0_29 = arith.constant 0 : index
      %c0_30 = arith.constant 0 : index
      %50 = vector.load %arg8[%c0_29, %c0_30] : memref<16x1xf32, #tpu.memory_space<vmem>>, vector<16x1xf32>
      tpu.vector_store %arg8[%c0_29, %c0_30], %49 {strides = array<i32>} : memref<16x1xf32, #tpu.memory_space<vmem>>, vector<16x1xf32>,
      %cst_31 = arith.constant 0.000000e+00 : f32
      %51 = vector.broadcast %cst_31 : f32 to vector<16x1xf32>
      %c0_32 = arith.constant 0 : index
      %c0_33 = arith.constant 0 : index
      %52 = vector.load %arg9[%c0_32, %c0_33] : memref<16x1xf32, #tpu.memory_space<vmem>>, vector<16x1xf32>
      tpu.vector_store %arg9[%c0_32, %c0_33], %51 {strides = array<i32>} : memref<16x1xf32, #tpu.memory_space<vmem>>, vector<16x1xf32>,
      %cst_34 = arith.constant 0.000000e+00 : f32
      %53 = vector.broadcast %cst_34 : f32 to vector<16x1xf32>
      %c0_35 = arith.constant 0 : index
      %c0_36 = arith.constant 0 : index
      %54 = vector.load %arg10[%c0_35, %c0_36] : memref<16x1xf32, #tpu.memory_space<vmem>>, vector<16x1xf32>
      tpu.vector_store %arg10[%c0_35, %c0_36], %53 {strides = array<i32>} : memref<16x1xf32, #tpu.memory_space<vmem>>, vector<16x1xf32>,
    } else {
    }
    %c0 = arith.constant 0 : index
    %c0_1 = arith.constant 0 : index
    %3 = vector.load %arg4[%c0, %c0_1] : memref<16x3xf32, #tpu.memory_space<vmem>>, vector<16x3xf32>
    %4 = vector.extract_strided_slice %3 {offsets = [0, 0], sizes = [16, 1], strides = [1, 1]} : vector<16x3xf32> to vector<16x1xf32>
    %5 = arith.fptosi %4 : vector<16x1xf32> to vector<16x1xi32>
    %6 = vector.extract_strided_slice %3 {offsets = [0, 1], sizes = [16, 1], strides = [1, 1]} : vector<16x3xf32> to vector<16x1xf32>
    %7 = arith.fptosi %6 : vector<16x1xf32> to vector<16x1xi32>
    %8 = vector.extract_strided_slice %3 {offsets = [0, 2], sizes = [16, 1], strides = [1, 1]} : vector<16x3xf32> to vector<16x1xf32>
    %c0_2 = arith.constant 0 : index
    %c0_3 = arith.constant 0 : index
    %9 = vector.load %arg2[%c0_2, %c0_3] : memref<16x128xf32, #tpu.memory_space<vmem>>, vector<16x128xf32>
    %c0_4 = arith.constant 0 : index
    %c0_5 = arith.constant 0 : index
    %10 = vector.load %arg3[%c0_4, %c0_5] : memref<16x64xf32, #tpu.memory_space<vmem>>, vector<16x64xf32>
    %11 = tpu.iota {dimensions = array<i32: 1>} : vector<16x128xi32>
    %12 = vector.broadcast %5 : vector<16x1xi32> to vector<16x128xi32>
    %13 = arith.cmpi eq, %11, %12 : vector<16x128xi32>
    %cst = arith.constant 0.000000e+00 : f32
    %14 = vector.broadcast %cst : f32 to vector<16x128xf32>
    %15 = arith.select %13, %9, %14 : vector<16x128xi1>, vector<16x128xf32>
    %cst_6 = arith.constant dense<0.000000e+00> : vector<16xf32>
    %16 = vector.multi_reduction <add>, %15, %cst_6 [1] : vector<16x128xf32> to vector<16xf32>
    %17 = vector.shape_cast %16 : vector<16xf32> to vector<16x1xf32>
    %18 = tpu.iota {dimensions = array<i32: 1>} : vector<16x64xi32>
    %19 = vector.broadcast %7 : vector<16x1xi32> to vector<16x64xi32>
    %20 = arith.cmpi eq, %18, %19 : vector<16x64xi32>
    %cst_7 = arith.constant 0.000000e+00 : f32
    %21 = vector.broadcast %cst_7 : f32 to vector<16x64xf32>
    %22 = arith.select %20, %10, %21 : vector<16x64xi1>, vector<16x64xf32>
    %cst_8 = arith.constant dense<0.000000e+00> : vector<16xf32>
    %23 = vector.multi_reduction <add>, %22, %cst_8 [1] : vector<16x64xf32> to vector<16xf32>
    %24 = vector.shape_cast %23 : vector<16xf32> to vector<16x1xf32>
    %cst_9 = arith.constant 0.000000e+00 : f32
    %25 = vector.broadcast %cst_9 : f32 to vector<16x1xf32>
    %26 = arith.cmpf one, %8, %25 : vector<16x1xf32>
    %c0_10 = arith.constant 0 : index
    %c0_11 = arith.constant 0 : index
    %27 = vector.load %arg8[%c0_10, %c0_11] : memref<16x1xf32, #tpu.memory_space<vmem>>, vector<16x1xf32>
    %cst_12 = arith.constant 0.000000e+00 : f32
    %28 = vector.broadcast %cst_12 : f32 to vector<16x1xf32>
    %29 = arith.subf %28, %17 : vector<16x1xf32>
    %30 = arith.mulf %29, %8 : vector<16x1xf32>
    %cst_13 = arith.constant 0.000000e+00 : f32
    %31 = vector.broadcast %cst_13 : f32 to vector<16x1xf32>
    %32 = arith.select %26, %30, %31 : vector<16x1xi1>, vector<16x1xf32>
    %33 = arith.addf %27, %32 : vector<16x1xf32>
    %c0_14 = arith.constant 0 : index
    %c0_15 = arith.constant 0 : index
    %34 = vector.load %arg8[%c0_14, %c0_15] : memref<16x1xf32, #tpu.memory_space<vmem>>, vector<16x1xf32>
    tpu.vector_store %arg8[%c0_14, %c0_15], %33 {strides = array<i32>} : memref<16x1xf32, #tpu.memory_space<vmem>>, vector<16x1xf32>,
    %c0_16 = arith.constant 0 : index
    %c0_17 = arith.constant 0 : index
    %35 = vector.load %arg9[%c0_16, %c0_17] : memref<16x1xf32, #tpu.memory_space<vmem>>, vector<16x1xf32>
    %cst_18 = arith.constant 0.000000e+00 : f32
    %36 = vector.broadcast %cst_18 : f32 to vector<16x1xf32>
    %37 = arith.subf %36, %24 : vector<16x1xf32>
    %38 = arith.mulf %37, %8 : vector<16x1xf32>
    %cst_19 = arith.constant 0.000000e+00 : f32
    %39 = vector.broadcast %cst_19 : f32 to vector<16x1xf32>
    %40 = arith.select %26, %38, %39 : vector<16x1xi1>, vector<16x1xf32>
    %41 = arith.addf %35, %40 : vector<16x1xf32>
    %c0_20 = arith.constant 0 : index
    %c0_21 = arith.constant 0 : index
    %42 = vector.load %arg9[%c0_20, %c0_21] : memref<16x1xf32, #tpu.memory_space<vmem>>, vector<16x1xf32>
    tpu.vector_store %arg9[%c0_20, %c0_21], %41 {strides = array<i32>} : memref<16x1xf32, #tpu.memory_space<vmem>>, vector<16x1xf32>,
    %c0_22 = arith.constant 0 : index
    %c0_23 = arith.constant 0 : index
    %43 = vector.load %arg10[%c0_22, %c0_23] : memref<16x1xf32, #tpu.memory_space<vmem>>, vector<16x1xf32>
    %44 = arith.addf %43, %8 : vector<16x1xf32>
    %c0_24 = arith.constant 0 : index
    %c0_25 = arith.constant 0 : index
    %45 = vector.load %arg10[%c0_24, %c0_25] : memref<16x1xf32, #tpu.memory_space<vmem>>, vector<16x1xf32>
    tpu.vector_store %arg10[%c0_24, %c0_25], %44 {strides = array<i32>} : memref<16x1xf32, #tpu.memory_space<vmem>>, vector<16x1xf32>,
    %c0_i32_26 = arith.constant 0 : i32
    %46 = arith.cmpi eq, %arg1, %c0_i32_26 : i32
    %47 = arith.extui %46 : i1 to i32
    %c0_i32_27 = arith.constant 0 : i32
    %48 = arith.cmpi ne, %47, %c0_i32_27 : i32
    scf.if %48 {
      %c0_28 = arith.constant 0 : index
      %c0_29 = arith.constant 0 : index
      %49 = vector.load %arg8[%c0_28, %c0_29] : memref<16x1xf32, #tpu.memory_space<vmem>>, vector<16x1xf32>
      %50 = vector.shape_cast %49 : vector<16x1xf32> to vector<1x16x1xf32>
      %cst_30 = arith.constant dense<0.000000e+00> : vector<1xf32>
      %51 = vector.multi_reduction <add>, %50, %cst_30 [1, 2] : vector<1x16x1xf32> to vector<1xf32>
      %52 = vector.shape_cast %51 : vector<1xf32> to vector<1x1x1xf32>
      %53 = vector.extract %52[0, 0, 0] : f32 from vector<1x1x1xf32>
      %54 = vector.broadcast %53 : f32 to vector<1x1x1xf32>
      %c0_31 = arith.constant 0 : index
      %c0_32 = arith.constant 0 : index
      %c0_33 = arith.constant 0 : index
      %55 = vector.load %arg5[%c0_31, %c0_32, %c0_33] : memref<1x1x1xf32, #tpu.memory_space<vmem>>, vector<1x1x1xf32>
      tpu.vector_store %arg5[%c0_31, %c0_32, %c0_33], %54 {strides = array<i32>} : memref<1x1x1xf32, #tpu.memory_space<vmem>>, vector<1x1x1xf32>,
      %c0_34 = arith.constant 0 : index
      %c0_35 = arith.constant 0 : index
      %56 = vector.load %arg9[%c0_34, %c0_35] : memref<16x1xf32, #tpu.memory_space<vmem>>, vector<16x1xf32>
      %57 = vector.shape_cast %56 : vector<16x1xf32> to vector<1x16x1xf32>
      %cst_36 = arith.constant dense<0.000000e+00> : vector<1xf32>
      %58 = vector.multi_reduction <add>, %57, %cst_36 [1, 2] : vector<1x16x1xf32> to vector<1xf32>
      %59 = vector.shape_cast %58 : vector<1xf32> to vector<1x1x1xf32>
      %60 = vector.extract %59[0, 0, 0] : f32 from vector<1x1x1xf32>
      %61 = vector.broadcast %60 : f32 to vector<1x1x1xf32>
      %c0_37 = arith.constant 0 : index
      %c0_38 = arith.constant 0 : index
      %c0_39 = arith.constant 0 : index
      %62 = vector.load %arg6[%c0_37, %c0_38, %c0_39] : memref<1x1x1xf32, #tpu.memory_space<vmem>>, vector<1x1x1xf32>
      tpu.vector_store %arg6[%c0_37, %c0_38, %c0_39], %61 {strides = array<i32>} : memref<1x1x1xf32, #tpu.memory_space<vmem>>, vector<1x1x1xf32>,
      %c0_40 = arith.constant 0 : index
      %c0_41 = arith.constant 0 : index
      %63 = vector.load %arg10[%c0_40, %c0_41] : memref<16x1xf32, #tpu.memory_space<vmem>>, vector<16x1xf32>
      %64 = vector.shape_cast %63 : vector<16x1xf32> to vector<1x16x1xf32>
      %cst_42 = arith.constant dense<0.000000e+00> : vector<1xf32>
      %65 = vector.multi_reduction <add>, %64, %cst_42 [1, 2] : vector<1x16x1xf32> to vector<1xf32>
      %66 = vector.shape_cast %65 : vector<1xf32> to vector<1x1x1xf32>
      %67 = vector.extract %66[0, 0, 0] : f32 from vector<1x1x1xf32>
      %68 = vector.broadcast %67 : f32 to vector<1x1x1xf32>
      %c0_43 = arith.constant 0 : index
      %c0_44 = arith.constant 0 : index
      %c0_45 = arith.constant 0 : index
      %69 = vector.load %arg7[%c0_43, %c0_44, %c0_45] : memref<1x1x1xf32, #tpu.memory_space<vmem>>, vector<1x1x1xf32>
      tpu.vector_store %arg7[%c0_43, %c0_44, %c0_45], %68 {strides = array<i32>} : memref<1x1x1xf32, #tpu.memory_space<vmem>>, vector<1x1x1xf32>,
    } else {
    }
    return
  }
  func.func @transform_0(%arg0: i32, %arg1: i32) -> (i32, i32) {
    %c1_i32 = arith.constant 1 : i32
    %0 = arith.muli %arg0, %c1_i32 : i32
    %1 = arith.addi %0, %arg1 : i32
    %c0_i32 = arith.constant 0 : i32
    %2 = arith.minsi %1, %c0_i32 : i32
    %c0_i32_0 = arith.constant 0 : i32
    %c0_i32_1 = arith.constant 0 : i32
    return %2, %c0_i32_0 : i32, i32
  }
  func.func @transform_1(%arg0: i32, %arg1: i32) -> (i32, i32) {
    %c1_i32 = arith.constant 1 : i32
    %0 = arith.muli %arg0, %c1_i32 : i32
    %1 = arith.addi %0, %arg1 : i32
    %c0_i32 = arith.constant 0 : i32
    %2 = arith.minsi %1, %c0_i32 : i32
    %c0_i32_0 = arith.constant 0 : i32
    %c0_i32_1 = arith.constant 0 : i32
    return %2, %c0_i32_0 : i32, i32
  }
  func.func @transform_2(%arg0: i32, %arg1: i32) -> (i32, i32) {
    %c1_i32 = arith.constant 1 : i32
    %0 = arith.muli %arg0, %c1_i32 : i32
    %1 = arith.addi %0, %arg1 : i32
    %c0_i32 = arith.constant 0 : i32
    %c0_i32_0 = arith.constant 0 : i32
    return %1, %c0_i32 : i32, i32
  }
  func.func @transform_3(%arg0: i32, %arg1: i32) -> (i32, i32, i32) {
    %c0_i32 = arith.constant 0 : i32
    %c0_i32_0 = arith.constant 0 : i32
    %c0_i32_1 = arith.constant 0 : i32
    return %arg0, %c0_i32, %c0_i32_0 : i32, i32, i32
  }
  func.func @transform_4(%arg0: i32, %arg1: i32) -> (i32, i32, i32) {
    %c0_i32 = arith.constant 0 : i32
    %c0_i32_0 = arith.constant 0 : i32
    %c0_i32_1 = arith.constant 0 : i32
    return %arg0, %c0_i32, %c0_i32_0 : i32, i32, i32
  }
  func.func @transform_5(%arg0: i32, %arg1: i32) -> (i32, i32, i32) {
    %c0_i32 = arith.constant 0 : i32
    %c0_i32_0 = arith.constant 0 : i32
    %c0_i32_1 = arith.constant 0 : i32
    return %arg0, %c0_i32, %c0_i32_0 : i32, i32, i32
  }
}

</mosaic_0001>

<llo_original>
// kernel: tpu_custom_call.1
$region0: #{tpu_custom_call.1}
  #allocation0 [shape = 'u32[]', space=smem, size = 0x4, offset = 0x4, fixed_abs, tag = 'smem constant byte address 0x4 - core index']
  #allocation1 [shape = 'u32[144,128]{1,0:T(1,128)}', space=vmem, size = 0x12000, scoped, tag = 'internal scratch']
  #allocation2 [shape = 'f32[16,1]{1,0:T(8,128)}', space=vmem, size = 0x2000, scoped, tag = 'scratch operand']
  #allocation3 [shape = 'f32[16,1]{1,0:T(8,128)}', space=vmem, size = 0x2000, scoped, tag = 'scratch operand']
  #allocation4 [shape = 'f32[16,1]{1,0:T(8,128)}', space=vmem, size = 0x2000, scoped, tag = 'scratch operand']
  %s0 = inlined_call_operand.vmem [shape: f32[16,128], index: 0, kind: input, shape index: {}]
  %s1 = inlined_call_operand.hbm [shape: f32[16,64], index: 1, kind: input, shape index: {}]
  %s2 = inlined_call_operand.vmem [shape: f32[16,3], index: 2, kind: input, shape index: {}]
  %s3 = inlined_call_operand.hbm [shape: f32[1,1,1], index: 3, kind: output, shape index: {0}]
  %s4 = inlined_call_operand.hbm [shape: f32[1,1,1], index: 4, kind: output, shape index: {1}]
  %s5 = inlined_call_operand.hbm [shape: f32[1,1,1], index: 5, kind: output, shape index: {2}]
  %6 = xla_tuple %s3, %s4, %s5
  %s7 = sld [smem:[#allocation0]]
  $region50: #{tpu_custom_call.1} parent=0
    _
  %s9 = ssub.s32 1, %s7
  %s10 = scalar_select 0, %s9, %s7
  $region1: #{tpu_custom_call.1} parent=0
    #allocation5 [shape = 'u8[8192]{0}', space=vmem, size = 0x2000, scoped, tag = 'input window, operand 1, single buffered']
    #allocation6 [shape = 's32[1]{0}', space=sflag, size = 0x4, scoped, tag = 'scoped memory for tpu_custom_call.1']
    #allocation7 [shape = 's32[1]{0}', space=sflag, size = 0x4, scoped, tag = 'scoped memory for tpu_custom_call.1']
    #allocation8 [shape = 'u8[512]{0}', space=vmem, size = 0x400, scoped, tag = 'output window, operand 0, single buffered']
    #allocation9 [shape = 'u8[512]{0}', space=vmem, size = 0x400, scoped, tag = 'output window, operand 1, single buffered']
    #allocation10 [shape = 's32[1]{0}', space=sflag, size = 0x4, scoped, tag = 'scoped memory for tpu_custom_call.1']
    #allocation11 [shape = 'u8[512]{0}', space=vmem, size = 0x400, scoped, tag = 'output window, operand 2, single buffered']
    %11 = vsyncpa [#allocation6], 0
    %12 = vsyncpa [#allocation7], 0
    %13 = vsyncpa [#allocation10], 0
    // Predicated region
    $region2: #{tpu_custom_call.1} parent=1 // pred_check
      _
    $region3: #{tpu_custom_call.1} parent=1 // pred_check_branch
      %15 = sbr.rel (0) target = $region5
    $region4: #{tpu_custom_call.1} parent=1 // pred_region
      %s16 = sadd.s32 0, 0
      %p17 = scmp.lt.s32.totalorder %s16, 0
      %s18 = scalar_select %p17, %s16, 0
      %s19 = smul.u32 2, %s18
      %p20 = scmp.lt.s32.totalorder %s19, 1
      %s21 = scalar_select %p20, %s19, 1
      %s22 = smul.addr %s21, 8
      %s23 = scalar_lea.vmem %s0, %s22
      %s24 = sadd.s32 0, 0
      %p25 = scmp.lt.s32.totalorder %s24, 0
      %s26 = scalar_select %p25, %s24, 0
      %s27 = smul.u32 2, %s26
    $region5: #{tpu_custom_call.1} parent=1 // pred_fallthru
      _
    // Predicated region
    $region6: #{tpu_custom_call.1} parent=1 // pred_check
      _
    $region7: #{tpu_custom_call.1} parent=1 // pred_check_branch
      %29 = sbr.rel (0) target = $region9
    $region8: #{tpu_custom_call.1} parent=1 // pred_region
      %s30 = sadd.s32 0, 0
      %p31 = scmp.lt.s32.totalorder %s30, 0
      %s32 = scalar_select %p31, %s30, 0
      %s33 = smul.u32 2, %s32
      %s35 = ssub.s32 256, 256
      %36 = vsyncadd [#allocation6], %s35
      %s37 = smul.addr %s33, 128
      %s38 = scalar_lea.hbm %s1, %s37
      %s39 = sshll.u32 [#allocation5], 4
      %s40 = int_to_ptr.vmem [resolvable:$true] %s39
      %45 = dma.hbm_to_vmem [thread:$0]  %s38, 256, %s40, [#allocation6], 128, 128, 8
    $region9: #{tpu_custom_call.1} parent=1 // pred_fallthru
      _
    // Predicated region
    $region10: #{tpu_custom_call.1} parent=1 // pred_check
      _
    $region11: #{tpu_custom_call.1} parent=1 // pred_check_branch
      %47 = sbr.rel (0) target = $region13
    $region12: #{tpu_custom_call.1} parent=1 // pred_region
      %s48 = sadd.s32 0, 0
      %s49 = smul.u32 2, %s48
      %p50 = scmp.lt.s32.totalorder %s49, 1
      %s51 = scalar_select %p50, %s49, 1
      %s52 = smul.addr %s51, 8
      %s53 = scalar_lea.vmem %s2, %s52
      %s54 = sadd.s32 0, 0
      %s55 = smul.u32 2, %s54
    $region13: #{tpu_custom_call.1} parent=1 // pred_fallthru
      _
    // Predicated region
    $region14: #{tpu_custom_call.1} parent=1 // pred_check
      _
    $region15: #{tpu_custom_call.1} parent=1 // pred_check_branch
      %57 = sbr.rel (0) target = $region17
    $region16: #{tpu_custom_call.1} parent=1 // pred_region
      %58 = dma.done [#allocation6], 256
    $region17: #{tpu_custom_call.1} parent=1 // pred_fallthru
      _
    %s59 = sadd.s32 0, 0
    %p60 = scmp.lt.s32.totalorder %s59, 0
    %s61 = scalar_select %p60, %s59, 0
    %s62 = smul.u32 2, %s61
    %p63 = scmp.lt.s32.totalorder %s62, 1
    %s64 = scalar_select %p63, %s62, 1
    %s65 = smul.addr %s64, 8
    %s66 = scalar_lea.vmem %s0, %s65
    %s67 = sadd.s32 0, 0
    %s68 = smul.u32 2, %s67
    %p69 = scmp.lt.s32.totalorder %s68, 1
    %s70 = scalar_select %p69, %s68, 1
    %s71 = smul.addr %s70, 8
    %s72 = scalar_lea.vmem %s2, %s71
    %s73 = sadd.s32 0, 0
    %p74 = scmp.lt.s32.totalorder %s73, 0
    %s75 = scalar_select %p74, %s73, 0
    %s76 = smul.u32 2, %s75
    %p77 = scmp.lt.s32.totalorder %s76, 1
    %s78 = scalar_select %p77, %s76, 1
    %s79 = smul.addr %s78, 8
    %s80 = scalar_lea.vmem %s0, %s79
    %s81 = sadd.s32 0, 0
    %p82 = scmp.lt.s32.totalorder %s81, 0
    %s83 = scalar_select %p82, %s81, 0
    %s84 = smul.u32 2, %s83
    %s85 = sadd.s32 0, 0
    %p86 = scmp.lt.s32.totalorder %s85, 0
    %s87 = scalar_select %p86, %s85, 0
    %s88 = smul.u32 2, %s87
    %s89 = sadd.s32 0, 0
    %s90 = smul.u32 2, %s89
    %p91 = scmp.lt.s32.totalorder %s90, 1
    %s92 = scalar_select %p91, %s90, 1
    %s93 = smul.addr %s92, 8
    %s94 = scalar_lea.vmem %s2, %s93
    %s95 = sadd.s32 0, 0
    %s96 = smul.u32 2, %s95
    %p97 = scmp.eq.s32.totalorder 0, 0
    // Predicated region
    $region18: #{tpu_custom_call.1} parent=1 // pred_check
      %p98 = pneg %p97
    $region19: #{tpu_custom_call.1} parent=1 // pred_check_branch
      %100 = sbr.rel (%p98) target = $region21
    $region20: #{tpu_custom_call.1} parent=1 // pred_region
      %vm101 = vcmask 7168
      %102 = vst.msk [vmem:[#allocation2] sm:$0xff] %vm101, 0.0
      %103 = vst.msk [vmem:[#allocation2 + $0x8] sm:$0xff] %vm101, 0.0
      %104 = vst.msk [vmem:[#allocation3] sm:$0xff] %vm101, 0.0
      %105 = vst.msk [vmem:[#allocation3 + $0x8] sm:$0xff] %vm101, 0.0
      %106 = vst.msk [vmem:[#allocation4] sm:$0xff] %vm101, 0.0
      %107 = vst.msk [vmem:[#allocation4 + $0x8] sm:$0xff] %vm101, 0.0
    $region21: #{tpu_custom_call.1} parent=1 // pred_fallthru
      _
    %v108 = vld [vmem:[%s94] sm:$0xff]
    %v109 = vld [vmem:[%s94 + $0x8] sm:$0xff]
    %v110 = vcvt.f32.s32.to.zero.pseudo %v108
    %v111 = vcvt.f32.s32.to.zero.pseudo %v109
    %v112 = vld [vmem:[%s80] sm:$0xff]
    %v113 = vld [vmem:[%s80 + $0x8] sm:$0xff]
    %v114 = vld [vmem:[#allocation5] sm:$0xff]
    %v115 = vld [vmem:[#allocation5 + $0x8] sm:$0xff]
    %v116 = vlaneseq
    %v117 = vand.u32 %v116, 127
    %118 = vset.pattern.permute.xlu0 0
    %119 = vperm.xlu0 %118, %v110
    %v120 = vpop.permute.xlu0 %119
    %121 = vset.pattern.permute.xlu0 0
    %122 = vperm.xlu0 %121, %v111
    %v123 = vpop.permute.xlu0 %122
    %vm124 = vcmp.eq.s32.totalorder %v117, %v120
    %vm125 = vcmp.eq.s32.totalorder %v117, %v123
    %v126 = vsel %vm124, %v112, 0.0
    %v127 = vsel %vm125, %v113, 0.0
    %128 = vadd.xlane.f32.xlu0 %v126
    %v129 = vpop.xlane.xlu0 %128
    %130 = vadd.xlane.f32.xlu0 %v127
    %v131 = vpop.xlane.xlu0 %130
    %132 = vset.pattern.permute.xlu0 1
    %133 = vperm.xlu0 %132, %v110
    %v134 = vpop.permute.xlu0 %133
    %135 = vset.pattern.permute.xlu0 1
    %136 = vperm.xlu0 %135, %v111
    %v137 = vpop.permute.xlu0 %136
    %vm138 = vcmp.eq.s32.totalorder %v117, %v134
    %vm139 = vcmp.eq.s32.totalorder %v117, %v137
    %v140 = vsel %vm138, %v114, 0.0
    %v141 = vsel %vm139, %v115, 0.0
    %vm142 = vcmask 523264
    %v143 = vsel %vm142, %v140, 0.0
    %144 = vadd.xlane.f32.xlu0 %v143
    %v145 = vpop.xlane.xlu0 %144
    %v146 = vsel %vm142, %v141, 0.0
    %147 = vadd.xlane.f32.xlu0 %v146
    %v148 = vpop.xlane.xlu0 %147
    %vm149 = vcmp.ne.f32.partialorder %v108, 0.0
    %vm150 = vcmp.ne.f32.partialorder %v109, 0.0
    %v151 = vld [vmem:[#allocation2] sm:$0xff]
    %v152 = vld [vmem:[#allocation2 + $0x8] sm:$0xff]
    %v153 = vsub.f32 0.0, %v129
    %v154 = vsub.f32 0.0, %v131
    %v155 = vmul.f32 %v153, %v108
    %v156 = vmul.f32 %v154, %v109
    %v157 = vsel %vm149, %v155, 0.0
    %v158 = vsel %vm150, %v156, 0.0
    %161 = vrot.lane.b32.xlu0 %v157, 126
    %v162 = vpop.permute.xlu0 %161
    %163 = vrot.lane.b32.xlu0 %v158, 126
    %v164 = vpop.permute.xlu0 %163
    %v167 = vadd.f32 %v151, %v162
    %v168 = vadd.f32 %v152, %v164
    %vm169 = vcmask 7168
    %170 = vst.msk [vmem:[#allocation2] sm:$0xff] %vm169, %v167
    %171 = vst.msk [vmem:[#allocation2 + $0x8] sm:$0xff] %vm169, %v168
    %v172 = vld [vmem:[#allocation3] sm:$0xff]
    %v173 = vld [vmem:[#allocation3 + $0x8] sm:$0xff]
    %v174 = vsub.f32 0.0, %v145
    %v175 = vsub.f32 0.0, %v148
    %v176 = vmul.f32 %v174, %v108
    %v177 = vmul.f32 %v175, %v109
    %v178 = vsel %vm149, %v176, 0.0
    %v179 = vsel %vm150, %v177, 0.0
    %182 = vrot.lane.b32.xlu0 %v178, 126
    %v183 = vpop.permute.xlu0 %182
    %184 = vrot.lane.b32.xlu0 %v179, 126
    %v185 = vpop.permute.xlu0 %184
    %v188 = vadd.f32 %v172, %v183
    %v189 = vadd.f32 %v173, %v185
    %190 = vst.msk [vmem:[#allocation3] sm:$0xff] %vm169, %v188
    %191 = vst.msk [vmem:[#allocation3 + $0x8] sm:$0xff] %vm169, %v189
    %v192 = vld [vmem:[#allocation4] sm:$0xff]
    %v193 = vld [vmem:[#allocation4 + $0x8] sm:$0xff]
    %196 = vrot.lane.b32.xlu0 %v108, 126
    %v197 = vpop.permute.xlu0 %196
    %198 = vrot.lane.b32.xlu0 %v109, 126
    %v199 = vpop.permute.xlu0 %198
    %v202 = vadd.f32 %v192, %v197
    %v203 = vadd.f32 %v193, %v199
    %204 = vst.msk [vmem:[#allocation4] sm:$0xff] %vm169, %v202
    %205 = vst.msk [vmem:[#allocation4 + $0x8] sm:$0xff] %vm169, %v203
    // Predicated region
    $region22: #{tpu_custom_call.1} parent=1 // pred_check
      %p206 = pneg %p97
    $region23: #{tpu_custom_call.1} parent=1 // pred_check_branch
      %208 = sbr.rel (%p206) target = $region25
    $region24: #{tpu_custom_call.1} parent=1 // pred_region
      %v209 = vld [vmem:[#allocation2] sm:$0xff]
      %v210 = vld [vmem:[#allocation2 + $0x8] sm:$0xff]
      %v211 = vsel %vm169, %v209, 0.0
      %v212 = vsel %vm169, %v210, 0.0
      %v213 = vadd.f32 %v211, %v212
      %214 = vadd.xlane.f32.xlu0 %v213
      %v215 = vpop.xlane.xlu0 %214
      %v216 = vrot.slane %v215, 4
      %v217 = vadd.f32 %v215, %v216
      %v218 = vrot.slane %v217, 2
      %v219 = vadd.f32 %v217, %v218
      %v220 = vrot.slane %v219, 1
      %v221 = vadd.f32 %v219, %v220
      %s222 = vtos %v221
      %v223 = vstv %s222
      %vm224 = vcmask 0
      %225 = vst.msk [vmem:[#allocation8] sm:$0x1] %vm224, %v223
      %v226 = vld [vmem:[#allocation3] sm:$0xff]
      %v227 = vld [vmem:[#allocation3 + $0x8] sm:$0xff]
      %v228 = vsel %vm169, %v226, 0.0
      %v229 = vsel %vm169, %v227, 0.0
      %v230 = vadd.f32 %v228, %v229
      %231 = vadd.xlane.f32.xlu0 %v230
      %v232 = vpop.xlane.xlu0 %231
      %v233 = vrot.slane %v232, 4
      %v234 = vadd.f32 %v232, %v233
      %v235 = vrot.slane %v234, 2
      %v236 = vadd.f32 %v234, %v235
      %v237 = vrot.slane %v236, 1
      %v238 = vadd.f32 %v236, %v237
      %s239 = vtos %v238
      %v240 = vstv %s239
      %241 = vst.msk [vmem:[#allocation9] sm:$0x1] %vm224, %v240
      %v242 = vld [vmem:[#allocation4] sm:$0xff]
      %v243 = vld [vmem:[#allocation4 + $0x8] sm:$0xff]
      %v244 = vsel %vm169, %v242, 0.0
      %v245 = vsel %vm169, %v243, 0.0
      %v246 = vadd.f32 %v244, %v245
      %247 = vadd.xlane.f32.xlu0 %v246
      %v248 = vpop.xlane.xlu0 %247
      %v249 = vrot.slane %v248, 4
      %v250 = vadd.f32 %v248, %v249
      %v251 = vrot.slane %v250, 2
      %v252 = vadd.f32 %v250, %v251
      %v253 = vrot.slane %v252, 1
      %v254 = vadd.f32 %v252, %v253
      %s255 = vtos %v254
      %v256 = vstv %s255
      %257 = vst.msk [vmem:[#allocation11] sm:$0x1] %vm224, %v256
    $region25: #{tpu_custom_call.1} parent=1 // pred_fallthru
      _
    // Predicated region
    $region26: #{tpu_custom_call.1} parent=1 // pred_check
      _
    $region27: #{tpu_custom_call.1} parent=1 // pred_check_branch
      %259 = sbr.rel (0) target = $region29
    $region28: #{tpu_custom_call.1} parent=1 // pred_region
      %s261 = ssub.s32 16, 16
      %262 = vsyncadd [#allocation7], %s261
      %s264 = sshll.u32 [#allocation8], 4
      %s265 = int_to_ptr.vmem [resolvable:$true] %s264
      %267 = dma.vmem_to_hbm [thread:$0]  %s265, 16, %s3, [#allocation7]
    $region29: #{tpu_custom_call.1} parent=1 // pred_fallthru
      _
    // Predicated region
    $region30: #{tpu_custom_call.1} parent=1 // pred_check
      _
    $region31: #{tpu_custom_call.1} parent=1 // pred_check_branch
      %269 = sbr.rel (0) target = $region33
    $region32: #{tpu_custom_call.1} parent=1 // pred_region
      %s271 = ssub.s32 16, 16
      %272 = vsyncadd [#allocation10], %s271
      %s274 = sshll.u32 [#allocation9], 4
      %s275 = int_to_ptr.vmem [resolvable:$true] %s274
      %277 = dma.vmem_to_hbm [thread:$0]  %s275, 16, %s4, [#allocation10]
    $region33: #{tpu_custom_call.1} parent=1 // pred_fallthru
      _
    // Predicated region
    $region34: #{tpu_custom_call.1} parent=1 // pred_check
      _
    $region35: #{tpu_custom_call.1} parent=1 // pred_check_branch
      %279 = sbr.rel (0) target = $region37
    $region36: #{tpu_custom_call.1} parent=1 // pred_region
      %s281 = ssub.s32 16, 16
      %282 = vsyncadd [#allocation10], %s281
      %s284 = sshll.u32 [#allocation11], 4
      %s285 = int_to_ptr.vmem [resolvable:$true] %s284
      %287 = dma.vmem_to_hbm [thread:$0]  %s285, 16, %s5, [#allocation10]
    $region37: #{tpu_custom_call.1} parent=1 // pred_fallthru
      _
    // Predicated region
    $region38: #{tpu_custom_call.1} parent=1 // pred_check
      _
    $region39: #{tpu_custom_call.1} parent=1 // pred_check_branch
      %289 = sbr.rel (0) target = $region41
    $region40: #{tpu_custom_call.1} parent=1 // pred_region
      %290 = dma.done [#allocation7], 16
    $region41: #{tpu_custom_call.1} parent=1 // pred_fallthru
      _
    // Predicated region
    $region42: #{tpu_custom_call.1} parent=1 // pred_check
      _
    $region43: #{tpu_custom_call.1} parent=1 // pred_check_branch
      %292 = sbr.rel (0) target = $region45
    $region44: #{tpu_custom_call.1} parent=1 // pred_region
      %293 = dma.done [#allocation10], 16
    $region45: #{tpu_custom_call.1} parent=1 // pred_fallthru
      _
    // Predicated region
    $region46: #{tpu_custom_call.1} parent=1 // pred_check
      _
    $region47: #{tpu_custom_call.1} parent=1 // pred_check_branch
      %295 = sbr.rel (0) target = $region49
    $region48: #{tpu_custom_call.1} parent=1 // pred_region
      %296 = dma.done [#allocation10], 16
    $region49: #{tpu_custom_call.1} parent=1 // pred_fallthru
      _
    %297 = vsyncpa [#allocation6], 1
    %298 = vsyncpa [#allocation7], 1
    %299 = vsyncpa [#allocation10], 1

</llo_original>
